<compile_context>
chip_gen: v6e
topology: v6e:2x2x1
jax: 0.10.0
libtpu: 0.0.40
codegen_flags: <defaults>
</compile_context>

<pallas_src>
import jax
import jax.numpy as jnp
from jax.experimental import pallas as pl
from jax.experimental.pallas import tpu as pltpu


def imaging_head_kernel(x_ref, w_ref, b_ref, out_ref):
    # x_ref: (TB, F) native dtype, w_ref: (F, 2) f32, b_ref: (1, 2) f32,
    # out_ref: (TB, 1) i32
    x = x_ref[...].astype(jnp.float32)
    # Linear layer on the MXU, f32 accumulate.
    logits = jnp.dot(x, w_ref[...], preferred_element_type=jnp.float32) + b_ref[...]
    # SiLU activation: z * sigmoid(z)  (sigmoid goes to the EUP slot -> ~free).
    act = logits * jax.nn.sigmoid(logits)
    # argmax over the 2 classes, first-index tie-break (matches torch/jnp).
    a0 = act[:, 0:1]  # (TB, 1)
    a1 = act[:, 1:2]  # (TB, 1)
    out_ref[...] = (a1 > a0).astype(jnp.int32)


def imaging_head_forward(x, w_t, b, *, tile_b=1024):
    """Eval-mode forward of ImagingHead.

    x      : (B, ...) any trailing shape whose product == F; any float dtype
             (kept in its native dtype -- bf16 halves HBM traffic).
    w_t    : (F, 2)  == torch Linear.weight.T
    b      : (2,)    == torch Linear.bias
    tile_b : target batch-tile rows (>= 512 recommended for HBM-roofline).
    returns (B,) int32 class indices.
    """
    B = x.shape[0]
    x_flat = x.reshape(B, -1)          # no dtype upcast in the wrapper
    F = x_flat.shape[1]
    assert w_t.shape == (F, 2), (w_t.shape, F)
    w32 = w_t.astype(jnp.float32)
    b2d = b.reshape(1, 2).astype(jnp.float32)

    dtype_bytes = jnp.dtype(x_flat.dtype).itemsize
    sublane = max(8, 32 // max(1, dtype_bytes))      # 8 f32, 16 bf16
    # Cap the tile so a single x buffer stays <= ~8 MiB (Pallas double-buffers it).
    max_rows = max(sublane, (8 * 1024 * 1024) // max(1, F * dtype_bytes))
    tb = min(tile_b, max_rows)
    tb = max(sublane, (tb // sublane) * sublane)
    if B <= tb:
        tb = B                                       # full-extent block is always legal
    grid = (pl.cdiv(B, tb),)

    out = pl.pallas_call(
        imaging_head_kernel,
        out_shape=jax.ShapeDtypeStruct((B, 1), jnp.int32),
        grid=grid,
        in_specs=[
            pl.BlockSpec((tb, F), lambda i: (i, 0)),     # streamed per batch tile
            pl.BlockSpec((F, 2), lambda i: (0, 0)),      # weights resident
            pl.BlockSpec((1, 2), lambda i: (0, 0)),      # bias resident
        ],
        out_specs=pl.BlockSpec((tb, 1), lambda i: (i, 0)),
        compiler_params=pltpu.CompilerParams(
            dimension_semantics=("parallel",)),          # megacore split on v7x
        cost_estimate=pl.CostEstimate(
            flops=4 * B * F,                              # (B,F)@(F,2)
            transcendentals=2 * B,                        # sigmoid per logit
            bytes_accessed=B * F * dtype_bytes + F * 2 * 4 + B * 4),
    )(x_flat, w32, b2d)
    return out[:, 0]


def imaging_head_reference(x, w_t, b):
    B = x.shape[0]
    flat = x.reshape(B, -1).astype(jnp.float32)
    logits = flat @ w_t.astype(jnp.float32) + b.astype(jnp.float32)[None, :]
    act = logits * jax.nn.sigmoid(logits)
    return jnp.argmax(act, axis=1).astype(jnp.int32)


if __name__ == "__main__":
    # Small, module-consistent shapes: width=0.0625, len=2
    #   in_features = round(512 * 0.0625) * 2 = 32 * 2 = 64
    B, LEN, C = 2, 2, 32
    F = LEN * C  # 64

    key = jax.random.PRNGKey(0)
    kx, kw, kb, kx2 = jax.random.split(key, 4)

    x = jax.random.normal(kx, (B, LEN, C), dtype=jnp.float32)
    # Deterministic Linear(F, 2) parameters (torch-style uniform bound 1/sqrt(F)).
    bound = 1.0 / jnp.sqrt(jnp.float32(F))
    w = jax.random.uniform(kw, (2, F), minval=-bound, maxval=bound,
                           dtype=jnp.float32)          # torch weight (out, in)
    b = jax.random.uniform(kb, (2,), minval=-bound, maxval=bound,
                           dtype=jnp.float32)

    # 1) small f32 batch (single tile, full-extent block)
    pred = jax.block_until_ready(imaging_head_forward(x, w.T, b))
    ref = imaging_head_reference(x, w.T, b)
    assert pred.shape == (B,), pred.shape
    assert pred.dtype == jnp.int32, pred.dtype
    assert bool(jnp.all(pred == ref)), (pred, ref)

    # 2) multi-tile grid (ragged last tile) + bf16 streaming path
    #    B=24, forced 16-row bf16 tiles -> grid=(2,), last tile padded.
    B2 = 24
    x2 = jax.random.normal(kx2, (B2, LEN, C), dtype=jnp.float32).astype(jnp.bfloat16)
    pred2 = jax.block_until_ready(imaging_head_forward(x2, w.T, b, tile_b=16))
    ref2 = imaging_head_reference(x2, w.T, b)
    assert pred2.shape == (B2,), pred2.shape
    assert bool(jnp.all(pred2 == ref2)), (pred2, ref2)

    print("KERNEL_OK")
</pallas_src>

<mosaic_0001>
module attributes {stable_mosaic.version = 11 : i64} {
  func.func @imaging_head_kernel(%arg0: i32, %arg1: memref<2x64xf32, #tpu.memory_space<vmem>>, %arg2: memref<64x2xf32, #tpu.memory_space<vmem>>, %arg3: memref<1x2xf32, #tpu.memory_space<vmem>>, %arg4: memref<2x1xi32, #tpu.memory_space<vmem>>) attributes {dimension_semantics = [#tpu.dimension_semantics<parallel>], iteration_bounds = array<i64: 1>, scalar_prefetch = 0 : i64, scratch_operands = 0 : i64, tpu.core_type = #tpu.core_type<tc>, window_params = [{transform_indices = @transform_0, window_bounds = array<i64: 2, 64>}, {pipeline_mode = #tpu.pipeline_mode<synchronous>, transform_indices = @transform_1, window_bounds = array<i64: 64, 2>}, {pipeline_mode = #tpu.pipeline_mode<synchronous>, transform_indices = @transform_2, window_bounds = array<i64: 1, 2>}, {transform_indices = @transform_3, window_bounds = array<i64: 2, 1>}]} {
    %c0 = arith.constant 0 : index
    %c0_0 = arith.constant 0 : index
    %0 = vector.load %arg1[%c0, %c0_0] : memref<2x64xf32, #tpu.memory_space<vmem>>, vector<2x64xf32>
    %c0_1 = arith.constant 0 : index
    %c0_2 = arith.constant 0 : index
    %1 = vector.load %arg2[%c0_1, %c0_2] : memref<64x2xf32, #tpu.memory_space<vmem>>, vector<64x2xf32>
    %cst = arith.constant dense<0.000000e+00> : vector<2x2xf32>
    %2 = tpu.matmul %0, %1, %cst {dimension_numbers = #tpu.dot_dimension_numbers<[1], [0], [0], [1], [0, 0, 1, 1], [], []>} : vector<2x64xf32>, vector<64x2xf32>, vector<2x2xf32> -> vector<2x2xf32>
    %c0_3 = arith.constant 0 : index
    %c0_4 = arith.constant 0 : index
    %3 = vector.load %arg3[%c0_3, %c0_4] : memref<1x2xf32, #tpu.memory_space<vmem>>, vector<1x2xf32>
    %4 = vector.broadcast %3 : vector<1x2xf32> to vector<2x2xf32>
    %5 = arith.addf %2, %4 : vector<2x2xf32>
    %6 = arith.negf %5 : vector<2x2xf32>
    %7 = math.exp %6 : vector<2x2xf32>
    %cst_5 = arith.constant 1.000000e+00 : f32
    %8 = vector.broadcast %cst_5 : f32 to vector<2x2xf32>
    %9 = arith.addf %8, %7 : vector<2x2xf32>
    %10 = arith.divf %8, %9 : vector<2x2xf32>
    %11 = arith.mulf %5, %10 : vector<2x2xf32>
    %12 = vector.extract_strided_slice %11 {offsets = [0, 0], sizes = [2, 1], strides = [1, 1]} : vector<2x2xf32> to vector<2x1xf32>
    %13 = vector.extract_strided_slice %11 {offsets = [0, 1], sizes = [2, 1], strides = [1, 1]} : vector<2x2xf32> to vector<2x1xf32>
    %14 = arith.cmpf ogt, %13, %12 : vector<2x1xf32>
    %15 = arith.extui %14 : vector<2x1xi1> to vector<2x1xi32>
    %c0_6 = arith.constant 0 : index
    %c0_7 = arith.constant 0 : index
    %16 = vector.load %arg4[%c0_6, %c0_7] : memref<2x1xi32, #tpu.memory_space<vmem>>, vector<2x1xi32>
    tpu.vector_store %arg4[%c0_6, %c0_7], %15 {strides = array<i32>} : memref<2x1xi32, #tpu.memory_space<vmem>>, vector<2x1xi32>,
    return
  }
  func.func @transform_0(%arg0: i32) -> (i32, i32) {
    %c0_i32 = arith.constant 0 : i32
    %c0_i32_0 = arith.constant 0 : i32
    return %arg0, %c0_i32 : i32, i32
  }
  func.func @transform_1(%arg0: i32) -> (i32, i32) {
    %c0_i32 = arith.constant 0 : i32
    %c0_i32_0 = arith.constant 0 : i32
    %c0_i32_1 = arith.constant 0 : i32
    return %c0_i32, %c0_i32_0 : i32, i32
  }
  func.func @transform_2(%arg0: i32) -> (i32, i32) {
    %c0_i32 = arith.constant 0 : i32
    %c0_i32_0 = arith.constant 0 : i32
    %c0_i32_1 = arith.constant 0 : i32
    return %c0_i32, %c0_i32_0 : i32, i32
  }
  func.func @transform_3(%arg0: i32) -> (i32, i32) {
    %c0_i32 = arith.constant 0 : i32
    %c0_i32_0 = arith.constant 0 : i32
    return %arg0, %c0_i32 : i32, i32
  }
}

</mosaic_0001>

<llo_original>
// kernel: tpu_custom_call.1
$region0: #{tpu_custom_call.1}
  #allocation0 [shape = 'u32[]', space=smem, size = 0x4, offset = 0x4, fixed_abs, tag = 'smem constant byte address 0x4 - core index']
  #allocation1 [shape = 'u32[144,128]{1,0:T(1,128)}', space=vmem, size = 0x12000, scoped, tag = 'internal scratch']
  %s0 = inlined_call_operand.vmem [shape: f32[2,64], index: 0, kind: input, shape index: {}]
  %s1 = inlined_call_operand.vmem [shape: f32[64,2], index: 1, kind: input, shape index: {}]
  %s2 = inlined_call_operand.vmem [shape: f32[1,2], index: 2, kind: input, shape index: {}]
  %s3 = inlined_call_operand.vmem [shape: s32[2,1], index: 3, kind: output, shape index: {}]
  %s4 = sld [smem:[#allocation0]]
  $region22: #{tpu_custom_call.1} parent=0
    _
  %s6 = ssub.s32 1, %s4
  %s7 = scalar_select 0, %s6, %s4
  // Predicated region
  $region2: #{tpu_custom_call.1} parent=0 // pred_check
    _
  $region3: #{tpu_custom_call.1} parent=0 // pred_check_branch
    %9 = sbr.rel (0) target = $region5
  $region4: #{tpu_custom_call.1} parent=0 // pred_region
    _
  $region5: #{tpu_custom_call.1} parent=0 // pred_fallthru
    _
  // Predicated region
  $region6: #{tpu_custom_call.1} parent=0 // pred_check
    _
  $region7: #{tpu_custom_call.1} parent=0 // pred_check_branch
    %11 = sbr.rel (0) target = $region9
  $region8: #{tpu_custom_call.1} parent=0 // pred_region
    _
  $region9: #{tpu_custom_call.1} parent=0 // pred_fallthru
    _
  // Predicated region
  $region10: #{tpu_custom_call.1} parent=0 // pred_check
    _
  $region11: #{tpu_custom_call.1} parent=0 // pred_check_branch
    %13 = sbr.rel (0) target = $region13
  $region12: #{tpu_custom_call.1} parent=0 // pred_region
    _
  $region13: #{tpu_custom_call.1} parent=0 // pred_fallthru
    _
  %v14 = vld [vmem:[%s0] sm:$0x3]
  %v15 = vld [vmem:[%s1] sm:$0xff]
  %v16 = vld [vmem:[%s1 + $0x8] sm:$0xff]
  %v17 = vld [vmem:[%s1 + $0x10] sm:$0xff]
  %v18 = vld [vmem:[%s1 + $0x18] sm:$0xff]
  %v19 = vld [vmem:[%s1 + $0x20] sm:$0xff]
  %v20 = vld [vmem:[%s1 + $0x28] sm:$0xff]
  %v21 = vld [vmem:[%s1 + $0x30] sm:$0xff]
  %v22 = vld [vmem:[%s1 + $0x38] sm:$0xff]
  %v23 = vld [vmem:[%s2] sm:$0x1]
  %v25 = vlaneseq
  %v26 = vshrl.u32 %v25, 7
  %v27 = vsub.s32 0, %v26
  %v28 = vrot.slane %v23, %v27
  %vm30 = vcmask 523264
  %v32 = vsel %vm30, %v14, 0
  %34 = vmatprep.subr.mxu0 0.0
  %35 = vmatpush1.msra.mxu0 0.0
  %36 = vmatprep.subr.mxu0 0.0
  %37 = vmatpush1.msra.mxu0 0.0
  %38 = vmatprep.subr.mxu0 0.0
  %39 = vmatpush1.msra.mxu0 0.0
  %40 = vmatprep.subr.mxu0 0.0
  %41 = vmatpush1.msra.mxu0 0.0
  %42 = vmatprep.subr.mxu0 0.0
  %43 = vmatpush1.msra.mxu0 0.0
  %44 = vmatprep.subr.mxu0 0.0
  %45 = vmatpush1.msra.mxu0 0.0
  %46 = vmatprep.subr.mxu0 0.0
  %47 = vmatpush1.msra.mxu0 0.0
  %48 = vmatprep.subr.mxu0 0.0
  %49 = vmatpush1.msra.mxu0 0.0
  %50 = vmatprep.subr.mxu0 0.0
  %51 = vmatpush1.msra.mxu0 %v22
  %52 = vmatprep.subr.mxu0 0.0
  %53 = vmatpush1.msra.mxu0 %v21
  %54 = vmatprep.subr.mxu0 0.0
  %55 = vmatpush1.msra.mxu0 %v20
  %56 = vmatprep.subr.mxu0 0.0
  %57 = vmatpush1.msra.mxu0 %v19
  %58 = vmatprep.subr.mxu0 0.0
  %59 = vmatpush1.msra.mxu0 %v18
  %60 = vmatprep.subr.mxu0 0.0
  %61 = vmatpush1.msra.mxu0 %v17
  %62 = vmatprep.subr.mxu0 0.0
  %63 = vmatpush1.msra.mxu0 %v16
  %64 = vmatprep.subr.mxu0 0.0
  %65 = vmatpush1.msra.mxu0 %v15
  %66 = vmatprep.subr.mxu0 0.0
  %67 = vmatpush2.msra.mxu0 0.0
  %68 = vmatprep.subr.mxu0 0.0
  %69 = vmatpush2.msra.mxu0 0.0
  %70 = vmatprep.subr.mxu0 0.0
  %71 = vmatpush2.msra.mxu0 0.0
  %72 = vmatprep.subr.mxu0 0.0
  %73 = vmatpush2.msra.mxu0 0.0
  %74 = vmatprep.subr.mxu0 0.0
  %75 = vmatpush2.msra.mxu0 0.0
  %76 = vmatprep.subr.mxu0 0.0
  %77 = vmatpush2.msra.mxu0 0.0
  %78 = vmatprep.subr.mxu0 0.0
  %79 = vmatpush2.msra.mxu0 0.0
  %80 = vmatprep.subr.mxu0 0.0
  %81 = vmatpush2.msra.mxu0 0.0
  %82 = vmatprep.subr.mxu0 0.0
  %83 = vmatpush2.msra.mxu0 0.0
  %84 = vmatprep.subr.mxu0 0.0
  %85 = vmatpush2.msra.mxu0 0.0
  %86 = vmatprep.subr.mxu0 0.0
  %87 = vmatpush2.msra.mxu0 0.0
  %88 = vmatprep.subr.mxu0 0.0
  %89 = vmatpush2.msra.mxu0 0.0
  %90 = vmatprep.subr.mxu0 0.0
  %91 = vmatpush2.msra.mxu0 0.0
  %92 = vmatprep.subr.mxu0 0.0
  %93 = vmatpush2.msra.mxu0 0.0
  %94 = vmatprep.subr.mxu0 0.0
  %95 = vmatpush2.msra.mxu0 0.0
  %96 = vmatprep.subr.mxu0 0.0
  %97 = vmatpush2.msra.mxu0 0.0
  %98 = vmatprep.mubr.f32.mxu0 0.0
  %99 = vmatmul.mubr.f32.gmra.mxu0 %v32
  %v100 = vpop.f32.mrf.mxu0
  %v101 = vadd.f32 %v28, %v100
  %v102 = vpop.f32.mrf.mxu0
  %103 = vdwg.mxu0
  %v104 = vxor.u32 %v101, 2147483648
  %v105 = vmul.f32 %v104, 1.442695
  %v106 = vpow.pop %v105
  %v107 = vadd.f32 %v106, 1.0
  %v108 = vrcp.pop %v107
  %v109 = vmul.f32 1.0, %v108
  %v110 = vmul.f32 %v101, %v109
  %112 = vrot.lane.b32.xlu0 %v110, 1
  %v113 = vpop.permute.xlu0 %112
  %vm115 = vcmp.gt.f32.partialorder %v110, %v113
  %v116 = vsel %vm115, 1, 0
  %117 = vrot.lane.b32.xlu0 %v116, 127
  %v118 = vpop.permute.xlu0 %117
  %vm119 = vcmask 1024
  %120 = vst.msk [vmem:[%s3] sm:$0x3] %vm119, %v118
  // Predicated region
  $region14: #{tpu_custom_call.1} parent=0 // pred_check
    _
  $region15: #{tpu_custom_call.1} parent=0 // pred_check_branch
    %122 = sbr.rel (0) target = $region17
  $region16: #{tpu_custom_call.1} parent=0 // pred_region
    _
  $region17: #{tpu_custom_call.1} parent=0 // pred_fallthru
    _
  // Predicated region
  $region18: #{tpu_custom_call.1} parent=0 // pred_check
    _
  $region19: #{tpu_custom_call.1} parent=0 // pred_check_branch
    %124 = sbr.rel (0) target = $region21
  $region20: #{tpu_custom_call.1} parent=0 // pred_region
    _
  $region21: #{tpu_custom_call.1} parent=0 // pred_fallthru
    _

</llo_original>
